<compile_context>
chip_gen: v7x
topology: tpu7x:2x2x1
jax: 0.10.0
libtpu: 0.0.40
codegen_flags: <defaults>
</compile_context>

<pallas_src>
import jax
import jax.numpy as jnp
from jax.experimental import pallas as pl
from jax.experimental.pallas import tpu as pltpu

N_STATES2 = 8
DQN_HIDDEN = 256
N_ACTIONS2 = 15


def net2_kernel(x_ref, w1_ref, b1_ref, w2_ref, b2_ref, o_ref):
    # fc1: [TB, 8] @ [8, 256] on the MXU with f32 accumulation; bias + ReLU in f32.
    # (K=8 is poor MXU utilization; only worth moving to 8 unrolled VPU
    #  broadcast-FMAs if the bundle ever shows vmatmul as the binding slot.)
    h = jnp.dot(x_ref[...], w1_ref[...], preferred_element_type=jnp.float32)
    h = jnp.maximum(h + b1_ref[...], 0.0)
    # fc2 in W2's dtype (bf16 fast path by default); f32 accumulate + f32 bias.
    h = h.astype(w2_ref.dtype)
    y = jnp.dot(h, w2_ref[...], preferred_element_type=jnp.float32)
    # Narrow 15-wide store: last dim equals the full array dim, so this is a
    # single contiguous (TB, 15) block write — no padded lanes, no slice pass.
    o_ref[...] = (y + b2_ref[...]).astype(o_ref.dtype)


def prepare_params(w1_t, b1, w2_t, b2, *, matmul_dtype=jnp.bfloat16):
    """One-time parameter prep (hoisted out of the per-step forward):
    weights in the MXU input dtype (bf16 by default for v5e/v6e/v7x MXUs),
    biases kept f32 so bias adds / ReLU stay f32 on every chip."""
    return (w1_t.astype(matmul_dtype), b1.astype(jnp.float32),
            w2_t.astype(matmul_dtype), b2.astype(jnp.float32))


def _choose_batch_tile(B):
    """Batch tile: sublane/MXU aligned, large enough to amortize the ~0.35 us
    per-grid-step overhead, trivially inside VMEM, and (for v7x megacore)
    giving >= 2 grid tiles for mid/large batches.  Prefers a tile that divides
    B exactly so no physical jnp.pad copy of x is needed."""
    if B <= 256:
        return max(16, pl.cdiv(B, 16) * 16)   # one tiny tile; packed-dtype safe
    cap = min(4096, B // 2)                   # >= 2 tiles so both v7x TCs work
    cap = max(256, (cap // 256) * 256)        # multiple of 256 (MXU rows)
    for tb in range(cap, 255, -256):          # largest 256-multiple dividing B
        if B % tb == 0:
            return tb
    return cap                                # ragged tail -> small pad below


def net2_forward(x, params):
    """x: [B, 8]; params = prepare_params(...) -> [B, 15] float32."""
    w1_t, b1_f32, w2_t, b2_f32 = params
    B = x.shape[0]
    out_dtype = jnp.float32

    TB = _choose_batch_tile(B)
    n_tiles = pl.cdiv(B, TB)
    B_pad = n_tiles * TB

    x = x.astype(w1_t.dtype)
    if B_pad != B:
        # TODO(synk): handle the ragged tail with a masked tail tile if this
        # extra pad pass ever shows up in profiles; tile choice usually avoids it.
        x = jnp.pad(x, ((0, B_pad - B), (0, 0)))

    out = pl.pallas_call(
        net2_kernel,
        out_shape=jax.ShapeDtypeStruct((B_pad, N_ACTIONS2), out_dtype),
        grid=(n_tiles,),
        in_specs=[
            pl.BlockSpec((TB, N_STATES2), lambda i: (i, 0)),           # x tile
            pl.BlockSpec((N_STATES2, DQN_HIDDEN), lambda i: (0, 0)),   # W1 (VMEM-resident)
            pl.BlockSpec((1, DQN_HIDDEN), lambda i: (0, 0)),           # b1 (resident)
            pl.BlockSpec((DQN_HIDDEN, N_ACTIONS2), lambda i: (0, 0)),  # W2 (resident)
            pl.BlockSpec((1, N_ACTIONS2), lambda i: (0, 0)),           # b2 (resident)
        ],
        out_specs=pl.BlockSpec((TB, N_ACTIONS2), lambda i: (i, 0)),
        compiler_params=pltpu.CompilerParams(
            dimension_semantics=("parallel",)),                        # v7x megacore
    )(x, w1_t, b1_f32, w2_t, b2_f32)

    return out if B_pad == B else out[:B]


def net2_forward_auto(x, params, *, min_kernel_batch=1024):
    """Tiny/medium batches: the fused XLA expression (single fusion, no
    wrapper ops) beats the custom kernel; only take the Pallas path once the
    batch is large enough for tiling/residency to matter."""
    w1_t, b1_f32, w2_t, b2_f32 = params
    if x.shape[0] < min_kernel_batch:
        h = jnp.maximum(jnp.dot(x.astype(w1_t.dtype), w1_t,
                                preferred_element_type=jnp.float32) + b1_f32, 0.0)
        return jnp.dot(h.astype(w2_t.dtype), w2_t,
                       preferred_element_type=jnp.float32) + b2_f32
    return net2_forward(x, params)


def init_params(key):
    """Matches the PyTorch module's shapes/init semantics: weights ~ N(0, 0.1);
    biases ~ U(-1/sqrt(fan_in), 1/sqrt(fan_in)) (PyTorch Linear default)."""
    k1, k2, k3, k4 = jax.random.split(key, 4)
    # PyTorch stores W as [out, in]; we keep the transposed [in, out] layout.
    w1_t = 0.1 * jax.random.normal(k1, (N_STATES2, DQN_HIDDEN), dtype=jnp.float32)
    bound1 = 1.0 / jnp.sqrt(float(N_STATES2))
    b1 = jax.random.uniform(k2, (1, DQN_HIDDEN), minval=-bound1, maxval=bound1,
                            dtype=jnp.float32)
    w2_t = 0.1 * jax.random.normal(k3, (DQN_HIDDEN, N_ACTIONS2), dtype=jnp.float32)
    bound2 = 1.0 / jnp.sqrt(float(DQN_HIDDEN))
    b2 = jax.random.uniform(k4, (1, N_ACTIONS2), minval=-bound2, maxval=bound2,
                            dtype=jnp.float32)
    return w1_t, b1, w2_t, b2


if __name__ == "__main__":
    key = jax.random.PRNGKey(0)
    kx, kp = jax.random.split(key)
    w1_t, b1, w2_t, b2 = init_params(kp)

    params_f32 = prepare_params(w1_t, b1, w2_t, b2, matmul_dtype=jnp.float32)
    params_bf16 = prepare_params(w1_t, b1, w2_t, b2)  # default bf16 MXU inputs

    # Small batch (module-scale shapes), exact f32 path: matches PyTorch forward.
    batch = 2
    x = jax.random.normal(kx, (batch, N_STATES2), dtype=jnp.float32)
    out = jax.block_until_ready(net2_forward(x, params_f32))
    ref = jnp.maximum(x @ w1_t + b1, 0.0) @ w2_t + b2
    assert out.shape == (batch, N_ACTIONS2)
    assert jnp.allclose(out, ref, atol=1e-5, rtol=1e-5)

    # Larger batch exercising the tiled multi-step grid (TB=256, 2 grid steps,
    # no pad copy since 256 divides 512).
    B2 = 512
    x2 = jax.random.normal(kx, (B2, N_STATES2), dtype=jnp.float32)
    out2 = jax.block_until_ready(net2_forward(x2, params_f32))
    ref2 = jnp.maximum(x2 @ w1_t + b1, 0.0) @ w2_t + b2
    assert out2.shape == (B2, N_ACTIONS2)
    assert jnp.allclose(out2, ref2, atol=1e-5, rtol=1e-5)

    # Default bf16-MXU-input path (f32 accumulate + f32 biases).
    out_bf16 = jax.block_until_ready(net2_forward(x2, params_bf16))
    assert out_bf16.shape == (B2, N_ACTIONS2)
    assert jnp.allclose(out_bf16, ref2, atol=5e-2, rtol=5e-2)

    # Auto dispatcher: tiny batch routes to the fused XLA expression.
    out_auto = jax.block_until_ready(net2_forward_auto(x, params_f32))
    assert out_auto.shape == (batch, N_ACTIONS2)
    assert jnp.allclose(out_auto, ref, atol=1e-5, rtol=1e-5)

    print("KERNEL_OK")
</pallas_src>

<mosaic_0001>
module attributes {stable_mosaic.version = 11 : i64} {
  func.func @net2_kernel(%arg0: i32, %arg1: memref<16x8xf32, #tpu.memory_space<vmem>>, %arg2: memref<8x256xf32, #tpu.memory_space<vmem>>, %arg3: memref<1x256xf32, #tpu.memory_space<vmem>>, %arg4: memref<256x15xf32, #tpu.memory_space<vmem>>, %arg5: memref<1x15xf32, #tpu.memory_space<vmem>>, %arg6: memref<16x15xf32, #tpu.memory_space<vmem>>) attributes {dimension_semantics = [#tpu.dimension_semantics<parallel>], iteration_bounds = array<i64: 1>, scalar_prefetch = 0 : i64, scratch_operands = 0 : i64, tpu.core_type = #tpu.core_type<tc>, window_params = [{transform_indices = @transform_0, window_bounds = array<i64: 16, 8>}, {pipeline_mode = #tpu.pipeline_mode<synchronous>, transform_indices = @transform_1, window_bounds = array<i64: 8, 256>}, {pipeline_mode = #tpu.pipeline_mode<synchronous>, transform_indices = @transform_2, window_bounds = array<i64: 1, 256>}, {pipeline_mode = #tpu.pipeline_mode<synchronous>, transform_indices = @transform_3, window_bounds = array<i64: 256, 15>}, {pipeline_mode = #tpu.pipeline_mode<synchronous>, transform_indices = @transform_4, window_bounds = array<i64: 1, 15>}, {transform_indices = @transform_5, window_bounds = array<i64: 16, 15>}]} {
    %c0 = arith.constant 0 : index
    %c0_0 = arith.constant 0 : index
    %0 = vector.load %arg1[%c0, %c0_0] : memref<16x8xf32, #tpu.memory_space<vmem>>, vector<16x8xf32>
    %c0_1 = arith.constant 0 : index
    %c0_2 = arith.constant 0 : index
    %1 = vector.load %arg2[%c0_1, %c0_2] : memref<8x256xf32, #tpu.memory_space<vmem>>, vector<8x256xf32>
    %cst = arith.constant dense<0.000000e+00> : vector<16x256xf32>
    %2 = tpu.matmul %0, %1, %cst {dimension_numbers = #tpu.dot_dimension_numbers<[1], [0], [0], [1], [0, 0, 1, 1], [], []>} : vector<16x8xf32>, vector<8x256xf32>, vector<16x256xf32> -> vector<16x256xf32>
    %c0_3 = arith.constant 0 : index
    %c0_4 = arith.constant 0 : index
    %3 = vector.load %arg3[%c0_3, %c0_4] : memref<1x256xf32, #tpu.memory_space<vmem>>, vector<1x256xf32>
    %4 = vector.broadcast %3 : vector<1x256xf32> to vector<16x256xf32>
    %5 = arith.addf %2, %4 : vector<16x256xf32>
    %cst_5 = arith.constant 0.000000e+00 : f32
    %6 = vector.broadcast %cst_5 : f32 to vector<16x256xf32>
    %7 = arith.maximumf %5, %6 : vector<16x256xf32>
    %c0_6 = arith.constant 0 : index
    %c0_7 = arith.constant 0 : index
    %8 = vector.load %arg4[%c0_6, %c0_7] : memref<256x15xf32, #tpu.memory_space<vmem>>, vector<256x15xf32>
    %cst_8 = arith.constant dense<0.000000e+00> : vector<16x15xf32>
    %9 = tpu.matmul %7, %8, %cst_8 {dimension_numbers = #tpu.dot_dimension_numbers<[1], [0], [0], [1], [0, 0, 1, 1], [], []>} : vector<16x256xf32>, vector<256x15xf32>, vector<16x15xf32> -> vector<16x15xf32>
    %c0_9 = arith.constant 0 : index
    %c0_10 = arith.constant 0 : index
    %10 = vector.load %arg5[%c0_9, %c0_10] : memref<1x15xf32, #tpu.memory_space<vmem>>, vector<1x15xf32>
    %11 = vector.broadcast %10 : vector<1x15xf32> to vector<16x15xf32>
    %12 = arith.addf %9, %11 : vector<16x15xf32>
    %c0_11 = arith.constant 0 : index
    %c0_12 = arith.constant 0 : index
    %13 = vector.load %arg6[%c0_11, %c0_12] : memref<16x15xf32, #tpu.memory_space<vmem>>, vector<16x15xf32>
    tpu.vector_store %arg6[%c0_11, %c0_12], %12 {strides = array<i32>} : memref<16x15xf32, #tpu.memory_space<vmem>>, vector<16x15xf32>,
    return
  }
  func.func @transform_0(%arg0: i32) -> (i32, i32) {
    %c0_i32 = arith.constant 0 : i32
    %c0_i32_0 = arith.constant 0 : i32
    return %arg0, %c0_i32 : i32, i32
  }
  func.func @transform_1(%arg0: i32) -> (i32, i32) {
    %c0_i32 = arith.constant 0 : i32
    %c0_i32_0 = arith.constant 0 : i32
    %c0_i32_1 = arith.constant 0 : i32
    return %c0_i32, %c0_i32_0 : i32, i32
  }
  func.func @transform_2(%arg0: i32) -> (i32, i32) {
    %c0_i32 = arith.constant 0 : i32
    %c0_i32_0 = arith.constant 0 : i32
    %c0_i32_1 = arith.constant 0 : i32
    return %c0_i32, %c0_i32_0 : i32, i32
  }
  func.func @transform_3(%arg0: i32) -> (i32, i32) {
    %c0_i32 = arith.constant 0 : i32
    %c0_i32_0 = arith.constant 0 : i32
    %c0_i32_1 = arith.constant 0 : i32
    return %c0_i32, %c0_i32_0 : i32, i32
  }
  func.func @transform_4(%arg0: i32) -> (i32, i32) {
    %c0_i32 = arith.constant 0 : i32
    %c0_i32_0 = arith.constant 0 : i32
    %c0_i32_1 = arith.constant 0 : i32
    return %c0_i32, %c0_i32_0 : i32, i32
  }
  func.func @transform_5(%arg0: i32) -> (i32, i32) {
    %c0_i32 = arith.constant 0 : i32
    %c0_i32_0 = arith.constant 0 : i32
    return %arg0, %c0_i32 : i32, i32
  }
}

</mosaic_0001>

<llo_original>
// kernel: tpu_custom_call.1
$region0: #{tpu_custom_call.1}
  #allocation0 [shape = 'u32[]', space=smem, size = 0x4, offset = 0x4, fixed_abs, tag = 'smem constant byte address 0x4 - core index']
  #allocation1 [shape = 'u32[144,128]{1,0:T(1,128)}', space=vmem, size = 0x12000, scoped, tag = 'internal scratch']
  %s0 = inlined_call_operand.vmem [shape: f32[16,8], index: 0, kind: input, shape index: {}]
  %s1 = inlined_call_operand.vmem [shape: f32[8,256], index: 1, kind: input, shape index: {}]
  %s2 = inlined_call_operand.vmem [shape: f32[1,256], index: 2, kind: input, shape index: {}]
  %s3 = inlined_call_operand.vmem [shape: f32[256,15], index: 3, kind: input, shape index: {}]
  %s4 = inlined_call_operand.vmem [shape: f32[1,15], index: 4, kind: input, shape index: {}]
  %s5 = inlined_call_operand.hbm [shape: f32[16,15], index: 5, kind: output, shape index: {}]
  %s6 = sld [smem:[#allocation0]]
  $region30: #{tpu_custom_call.1} parent=0
    _
  %s8 = ssub.s32 1, %s6
  %s9 = scalar_select 0, %s8, %s6
  $region1: #{tpu_custom_call.1} parent=0
    #allocation2 [shape = 'u8[8192]{0}', space=vmem, size = 0x2000, scoped, tag = 'output window, operand 0, single buffered']
    #allocation3 [shape = 's32[1]{0}', space=sflag, size = 0x4, scoped, tag = 'scoped memory for tpu_custom_call.1']
    %10 = vsyncpa [#allocation3], 0
    // Predicated region
    $region2: #{tpu_custom_call.1} parent=1 // pred_check
      _
    $region3: #{tpu_custom_call.1} parent=1 // pred_check_branch
      %12 = sbr.rel (0) target = $region5
    $region4: #{tpu_custom_call.1} parent=1 // pred_region
      _
    $region5: #{tpu_custom_call.1} parent=1 // pred_fallthru
      _
    // Predicated region
    $region6: #{tpu_custom_call.1} parent=1 // pred_check
      _
    $region7: #{tpu_custom_call.1} parent=1 // pred_check_branch
      %14 = sbr.rel (0) target = $region9
    $region8: #{tpu_custom_call.1} parent=1 // pred_region
      _
    $region9: #{tpu_custom_call.1} parent=1 // pred_fallthru
      _
    // Predicated region
    $region10: #{tpu_custom_call.1} parent=1 // pred_check
      _
    $region11: #{tpu_custom_call.1} parent=1 // pred_check_branch
      %16 = sbr.rel (0) target = $region13
    $region12: #{tpu_custom_call.1} parent=1 // pred_region
      _
    $region13: #{tpu_custom_call.1} parent=1 // pred_fallthru
      _
    // Predicated region
    $region14: #{tpu_custom_call.1} parent=1 // pred_check
      _
    $region15: #{tpu_custom_call.1} parent=1 // pred_check_branch
      %18 = sbr.rel (0) target = $region17
    $region16: #{tpu_custom_call.1} parent=1 // pred_region
      _
    $region17: #{tpu_custom_call.1} parent=1 // pred_fallthru
      _
    // Predicated region
    $region18: #{tpu_custom_call.1} parent=1 // pred_check
      _
    $region19: #{tpu_custom_call.1} parent=1 // pred_check_branch
      %20 = sbr.rel (0) target = $region21
    $region20: #{tpu_custom_call.1} parent=1 // pred_region
      _
    $region21: #{tpu_custom_call.1} parent=1 // pred_fallthru
      _
    %v21 = vld [vmem:[%s0] sm:$0xff]
    %v22 = vld [vmem:[%s0 + $0x8] sm:$0xff]
    %v23 = vld [vmem:[%s1] sm:$0xff]
    %v24 = vld [vmem:[%s1 + $0x8] sm:$0xff]
    %v25 = vld [vmem:[%s2] sm:$0x3]
    %v27 = vlaneseq
    %v28 = vshrl.u32 %v27, 7
    %v29 = vsub.s32 0, %v28
    %v30 = vrot.slane %v25, %v29
    %v31 = vlaneseq
    %v32 = vshrl.u32 %v31, 7
    %v33 = vsub.s32 1, %v32
    %v34 = vrot.slane %v25, %v33
    %vm37 = vcmask 64512
    %v39 = vsel %vm37, %v21, 0
    %v42 = vsel %vm37, %v22, 0
    %44 = vmatprep.subr.mxu0 %v24
    %45 = vmatpush1.msra.mxu0 %v23
    %46 = vmatprep.subr.mxu0 0.0
    %47 = vmatpush1.msra.mxu0 0.0
    %48 = vmatprep.subr.mxu0 0.0
    %49 = vmatpush1.msra.mxu0 0.0
    %50 = vmatprep.subr.mxu0 0.0
    %51 = vmatpush1.msra.mxu0 0.0
    %52 = vmatprep.subr.mxu0 0.0
    %53 = vmatpush1.msra.mxu0 0.0
    %54 = vmatprep.subr.mxu0 0.0
    %55 = vmatpush1.msra.mxu0 0.0
    %56 = vmatprep.subr.mxu0 0.0
    %57 = vmatpush1.msra.mxu0 0.0
    %58 = vmatprep.subr.mxu0 0.0
    %59 = vmatpush1.msra.mxu0 0.0
    %60 = vmatprep.subr.mxu0 0.0
    %61 = vmatpush1.msra.mxu0 0.0
    %62 = vmatprep.subr.mxu0 0.0
    %63 = vmatpush1.msra.mxu0 0.0
    %64 = vmatprep.subr.mxu0 0.0
    %65 = vmatpush1.msra.mxu0 0.0
    %66 = vmatprep.subr.mxu0 0.0
    %67 = vmatpush1.msra.mxu0 0.0
    %68 = vmatprep.subr.mxu0 0.0
    %69 = vmatpush1.msra.mxu0 0.0
    %70 = vmatprep.subr.mxu0 0.0
    %71 = vmatpush1.msra.mxu0 0.0
    %72 = vmatprep.subr.mxu0 0.0
    %73 = vmatpush1.msra.mxu0 0.0
    %74 = vmatprep.subr.mxu0 0.0
    %75 = vmatpush1.msra.mxu0 0.0
    %76 = vmatprep.subr.mxu0 0.0
    %77 = vmatpush1.msra.mxu0 0.0
    %78 = vmatprep.subr.mxu0 0.0
    %79 = vmatpush1.msra.mxu0 0.0
    %80 = vmatprep.subr.mxu0 0.0
    %81 = vmatpush1.msra.mxu0 0.0
    %82 = vmatprep.subr.mxu0 0.0
    %83 = vmatpush1.msra.mxu0 0.0
    %84 = vmatprep.subr.mxu0 0.0
    %85 = vmatpush1.msra.mxu0 0.0
    %86 = vmatprep.subr.mxu0 0.0
    %87 = vmatpush1.msra.mxu0 0.0
    %88 = vmatprep.subr.mxu0 0.0
    %89 = vmatpush1.msra.mxu0 0.0
    %90 = vmatprep.subr.mxu0 0.0
    %91 = vmatpush1.msra.mxu0 0.0
    %92 = vmatprep.subr.mxu0 0.0
    %93 = vmatpush1.msra.mxu0 0.0
    %94 = vmatprep.subr.mxu0 0.0
    %95 = vmatpush1.msra.mxu0 0.0
    %96 = vmatprep.subr.mxu0 0.0
    %97 = vmatpush1.msra.mxu0 0.0
    %98 = vmatprep.subr.mxu0 0.0
    %99 = vmatpush1.msra.mxu0 0.0
    %100 = vmatprep.subr.mxu0 0.0
    %101 = vmatpush1.msra.mxu0 0.0
    %102 = vmatprep.subr.mxu0 0.0
    %103 = vmatpush1.msra.mxu0 0.0
    %104 = vmatprep.subr.mxu0 0.0
    %105 = vmatpush1.msra.mxu0 0.0
    %106 = vmatprep.subr.mxu0 0.0
    %107 = vmatpush1.msra.mxu0 0.0
    %108 = vmatprep.mubr.f32.mxu0 0.0
    %109 = vmatmul.mubr.f32.gmra.mrb[0].mxu0 %v39
    %v110 = vpop.f32.mrb[0].mxu0
    %v111 = vadd.f32 %v30, %v110
    %v112 = vpop.f32.mrb[0].mxu0
    %v113 = vadd.f32 %v34, %v112
    %114 = vmatprep.mubr.f32.mxu0 0.0
    %115 = vmatmul.mubr.f32.gmra.mrb[0].mxu0 %v42
    %v116 = vpop.f32.mrb[0].mxu0
    %v117 = vadd.f32 %v30, %v116
    %v118 = vpop.f32.mrb[0].mxu0
    %v119 = vadd.f32 %v34, %v118
    %120 = vdwg.mxu0
    %v121 = vmax.f32 %v111, 0.0
    %v122 = vmax.f32 %v113, 0.0
    %v123 = vmax.f32 %v117, 0.0
    %v124 = vmax.f32 %v119, 0.0
    %v125 = vld [vmem:[%s3] sm:$0xff]
    %v126 = vld [vmem:[%s3 + $0x8] sm:$0xff]
    %v127 = vld [vmem:[%s3 + $0x10] sm:$0xff]
    %v128 = vld [vmem:[%s3 + $0x18] sm:$0xff]
    %v129 = vld [vmem:[%s3 + $0x20] sm:$0xff]
    %v130 = vld [vmem:[%s3 + $0x28] sm:$0xff]
    %v131 = vld [vmem:[%s3 + $0x30] sm:$0xff]
    %v132 = vld [vmem:[%s3 + $0x38] sm:$0xff]
    %v133 = vld [vmem:[%s3 + $0x40] sm:$0xff]
    %v134 = vld [vmem:[%s3 + $0x48] sm:$0xff]
    %v135 = vld [vmem:[%s3 + $0x50] sm:$0xff]
    %v136 = vld [vmem:[%s3 + $0x58] sm:$0xff]
    %v137 = vld [vmem:[%s3 + $0x60] sm:$0xff]
    %v138 = vld [vmem:[%s3 + $0x68] sm:$0xff]
    %v139 = vld [vmem:[%s3 + $0x70] sm:$0xff]
    %v140 = vld [vmem:[%s3 + $0x78] sm:$0xff]
    %v141 = vld [vmem:[%s3 + $0x80] sm:$0xff]
    %v142 = vld [vmem:[%s3 + $0x88] sm:$0xff]
    %v143 = vld [vmem:[%s3 + $0x90] sm:$0xff]
    %v144 = vld [vmem:[%s3 + $0x98] sm:$0xff]
    %v145 = vld [vmem:[%s3 + $0xa0] sm:$0xff]
    %v146 = vld [vmem:[%s3 + $0xa8] sm:$0xff]
    %v147 = vld [vmem:[%s3 + $0xb0] sm:$0xff]
    %v148 = vld [vmem:[%s3 + $0xb8] sm:$0xff]
    %v149 = vld [vmem:[%s3 + $0xc0] sm:$0xff]
    %v150 = vld [vmem:[%s3 + $0xc8] sm:$0xff]
    %v151 = vld [vmem:[%s3 + $0xd0] sm:$0xff]
    %v152 = vld [vmem:[%s3 + $0xd8] sm:$0xff]
    %v153 = vld [vmem:[%s3 + $0xe0] sm:$0xff]
    %v154 = vld [vmem:[%s3 + $0xe8] sm:$0xff]
    %v155 = vld [vmem:[%s3 + $0xf0] sm:$0xff]
    %v156 = vld [vmem:[%s3 + $0xf8] sm:$0xff]
    %v157 = vld [vmem:[%s4] sm:$0x1]
    %v159 = vlaneseq
    %v160 = vshrl.u32 %v159, 7
    %v161 = vsub.s32 0, %v160
    %v162 = vrot.slane %v157, %v161
    %164 = vmatprep.subr.mxu0 0.0
    %165 = vmatpush1.msra.mxu0 %v125
    %166 = vmatprep.subr.mxu0 0.0
    %167 = vmatpush1.msra.mxu0 %v126
    %168 = vmatprep.subr.mxu0 0.0
    %169 = vmatpush1.msra.mxu0 %v127
    %170 = vmatprep.subr.mxu0 0.0
    %171 = vmatpush1.msra.mxu0 %v128
    %172 = vmatprep.subr.mxu0 0.0
    %173 = vmatpush1.msra.mxu0 %v129
    %174 = vmatprep.subr.mxu0 0.0
    %175 = vmatpush1.msra.mxu0 %v130
    %176 = vmatprep.subr.mxu0 0.0
    %177 = vmatpush1.msra.mxu0 %v131
    %178 = vmatprep.subr.mxu0 0.0
    %179 = vmatpush1.msra.mxu0 %v132
    %180 = vmatprep.subr.mxu0 0.0
    %181 = vmatpush1.msra.mxu0 %v133
    %182 = vmatprep.subr.mxu0 0.0
    %183 = vmatpush1.msra.mxu0 %v134
    %184 = vmatprep.subr.mxu0 0.0
    %185 = vmatpush1.msra.mxu0 %v135
    %186 = vmatprep.subr.mxu0 0.0
    %187 = vmatpush1.msra.mxu0 %v136
    %188 = vmatprep.subr.mxu0 0.0
    %189 = vmatpush1.msra.mxu0 %v137
    %190 = vmatprep.subr.mxu0 0.0
    %191 = vmatpush1.msra.mxu0 %v138
    %192 = vmatprep.subr.mxu0 0.0
    %193 = vmatpush1.msra.mxu0 %v139
    %194 = vmatprep.subr.mxu0 0.0
    %195 = vmatpush1.msra.mxu0 %v140
    %196 = vmatprep.subr.mxu0 0.0
    %197 = vmatpush1.msra.mxu0 %v141
    %198 = vmatprep.subr.mxu0 0.0
    %199 = vmatpush1.msra.mxu0 %v142
    %200 = vmatprep.subr.mxu0 0.0
    %201 = vmatpush1.msra.mxu0 %v143
    %202 = vmatprep.subr.mxu0 0.0
    %203 = vmatpush1.msra.mxu0 %v144
    %204 = vmatprep.subr.mxu0 0.0
    %205 = vmatpush1.msra.mxu0 %v145
    %206 = vmatprep.subr.mxu0 0.0
    %207 = vmatpush1.msra.mxu0 %v146
    %208 = vmatprep.subr.mxu0 0.0
    %209 = vmatpush1.msra.mxu0 %v147
    %210 = vmatprep.subr.mxu0 0.0
    %211 = vmatpush1.msra.mxu0 %v148
    %212 = vmatprep.subr.mxu0 0.0
    %213 = vmatpush1.msra.mxu0 %v149
    %214 = vmatprep.subr.mxu0 0.0
    %215 = vmatpush1.msra.mxu0 %v150
    %216 = vmatprep.subr.mxu0 0.0
    %217 = vmatpush1.msra.mxu0 %v151
    %218 = vmatprep.subr.mxu0 0.0
    %219 = vmatpush1.msra.mxu0 %v152
    %220 = vmatprep.subr.mxu0 0.0
    %221 = vmatpush1.msra.mxu0 %v153
    %222 = vmatprep.subr.mxu0 0.0
    %223 = vmatpush1.msra.mxu0 %v154
    %224 = vmatprep.subr.mxu0 0.0
    %225 = vmatpush1.msra.mxu0 %v155
    %226 = vmatprep.subr.mxu0 0.0
    %227 = vmatpush1.msra.mxu0 %v156
    %228 = vmatprep.mubr.f32.mxu0 %v122
    %229 = vmatmul.mubr.f32.gmra.mrb[0].mxu0 %v121
    %v230 = vpop.f32.mrb[0].mxu0
    %v231 = vadd.f32 %v162, %v230
    %v232 = vpop.f32.mrb[0].mxu0
    %233 = vmatprep.mubr.f32.mxu0 %v124
    %234 = vmatmul.mubr.f32.gmra.mrb[0].mxu0 %v123
    %v235 = vpop.f32.mrb[0].mxu0
    %v236 = vadd.f32 %v162, %v235
    %v237 = vpop.f32.mrb[0].mxu0
    %238 = vdwg.mxu0
    %vm239 = vcmask 121856
    %240 = vst.msk [vmem:[#allocation2] sm:$0xff] %vm239, %v231
    %241 = vst.msk [vmem:[#allocation2 + $0x8] sm:$0xff] %vm239, %v236
    // Predicated region
    $region22: #{tpu_custom_call.1} parent=1 // pred_check
      _
    $region23: #{tpu_custom_call.1} parent=1 // pred_check_branch
      %243 = sbr.rel (0) target = $region25
    $region24: #{tpu_custom_call.1} parent=1 // pred_region
      %s245 = ssub.s32 256, 256
      %246 = vsyncadd [#allocation3], %s245
      %s247 = sshll.u32 [#allocation2], 4
      %s248 = int_to_ptr.vmem [resolvable:$true] %s247
      %253 = dma.vmem_to_hbm [thread:$0]  %s248, 256, %s5, [#allocation3], 128, 128, 8
    $region25: #{tpu_custom_call.1} parent=1 // pred_fallthru
      _
    // Predicated region
    $region26: #{tpu_custom_call.1} parent=1 // pred_check
      _
    $region27: #{tpu_custom_call.1} parent=1 // pred_check_branch
      %255 = sbr.rel (0) target = $region29
    $region28: #{tpu_custom_call.1} parent=1 // pred_region
      %256 = dma.done [#allocation3], 256
    $region29: #{tpu_custom_call.1} parent=1 // pred_fallthru
      _
    %257 = vsyncpa [#allocation3], 1

</llo_original>
